<compile_context>
chip_gen: v7x
topology: tpu7x:2x2x1
jax: 0.10.0
libtpu: 0.0.40
codegen_flags: <defaults>
</compile_context>

<pallas_src>
import math
from functools import partial

import jax
import jax.numpy as jnp
from jax import lax
from jax.experimental import pallas as pl
from jax.experimental.pallas import tpu as pltpu

ESP = 1e-12

_LANES = 1024                        # lane-axis width (multiple of 128)
_TILE_BYTES = 4 * 1024 * 1024        # ~4 MiB per input block
_VMEM_LIMIT = 32 * 1024 * 1024       # 2 inputs x 2 buffers x 4 MiB + headroom


def _cdiv(a, b):
    return -(-a // b)


def _make_kernel(total, n_tiles, r3, sub, lanes, g_inner, grid_tiles):
    """Streaming sum of sqrt(p*g + eps) into a resident (sub, lanes) slab."""
    group_elems = sub * lanes
    block_elems = r3 * group_elems
    last_tile = n_tiles - 1
    # Valid elements inside the last real tile (static Python int).
    last_rem = total - last_tile * block_elems
    has_ragged = (last_rem != block_elems)
    has_phantom = (grid_tiles != n_tiles)
    unroll = min(4, r3)

    def kernel(p_ref, g_ref, out_ref):
        o = pl.program_id(0)
        j = pl.program_id(1)
        tile = o * g_inner + j

        @pl.when(j == 0)
        def _zero():
            out_ref[...] = jnp.zeros_like(out_ref)

        def group_prod(i):
            # Upcast (no-op for f32 inputs) before any arithmetic (v5e-safe).
            return (p_ref[i].astype(jnp.float32) *
                    g_ref[i].astype(jnp.float32) + ESP)

        def accum_full():
            def body(i, acc):
                return acc + jnp.sqrt(group_prod(i))
            out_ref[...] += lax.fori_loop(
                0, r3, body, jnp.zeros((sub, lanes), jnp.float32),
                unroll=unroll)

        def accum_tail():
            # Only the last real tile pays for masking.  Compare an in-group
            # offset against the (small, static) in-tile remainder; garbage
            # rows / padded zeros past the end are selected to 0 before sqrt.
            off = (lax.broadcasted_iota(jnp.int32, (sub, lanes), 0) * lanes +
                   lax.broadcasted_iota(jnp.int32, (sub, lanes), 1))

            def body(i, acc):
                keep = off < (last_rem - i * group_elems)
                x = jnp.where(keep, group_prod(i), 0.0)
                return acc + jnp.sqrt(x)

            out_ref[...] += lax.fori_loop(
                0, r3, body, jnp.zeros((sub, lanes), jnp.float32),
                unroll=unroll)

        if has_ragged:
            @pl.when(tile < last_tile)
            def _full():
                accum_full()

            @pl.when(tile == last_tile)
            def _tail():
                accum_tail()
            # tile > last_tile (phantom steps, clamped index map) falls
            # through both branches and contributes nothing.
        elif has_phantom:
            @pl.when(tile < n_tiles)
            def _full():
                accum_full()
        else:
            accum_full()

    return kernel


@partial(jax.jit, static_argnames=("max_tile_bytes",))
def fidelity_loss_distortion(p, g, *, max_tile_bytes=_TILE_BYTES):
    """JAX/Pallas equivalent of Fidelity_Loss_distortion.forward(p, g).

    Accepts (B, C) or (B, C, *spatial) inputs (PyTorch NC / NCHW layout).
    Returns a scalar float32 loss.
    """
    assert p.shape == g.shape, "p and g must have the same shape"
    assert p.ndim >= 2, "expected at least (batch, channels)"
    channels = p.shape[1]
    total = math.prod(p.shape)
    n_positions = total // channels           # B * prod(spatial) ("rows")

    # Stream bf16 natively (half the HBM bytes); everything else as f32.
    work_dtype = jnp.promote_types(p.dtype, g.dtype)
    if work_dtype == jnp.bfloat16:
        stream_dtype, sub = jnp.bfloat16, 16
    else:
        stream_dtype, sub = jnp.float32, 8
    lanes = _LANES
    unit = sub * lanes                        # elements per (sub, lanes) group

    if p.dtype != stream_dtype:
        p = p.astype(stream_dtype)
    if g.dtype != stream_dtype:
        g = g.astype(stream_dtype)
    pf = p.reshape(-1)
    gf = g.reshape(-1)

    groups = _cdiv(total, unit)
    padded = groups * unit
    if padded != total:
        # Uncommon (unaligned) path: pad up to one group boundary.  The padded
        # zeros are excluded by the in-kernel tail mask.  Large image-like
        # inputs are normally multiples of `unit`, so the common big-input
        # path is a pure reshape (bitcast) with no extra HBM copy.
        pf = jnp.pad(pf, (0, padded - total))
        gf = jnp.pad(gf, (0, padded - total))
    p3 = pf.reshape(groups, sub, lanes)
    g3 = gf.reshape(groups, sub, lanes)

    # ~max_tile_bytes per input block (same byte size for f32 and bf16 groups).
    group_bytes = unit * jnp.dtype(stream_dtype).itemsize
    r3 = max(1, min(max_tile_bytes // group_bytes, groups))
    n_tiles = _cdiv(groups, r3)

    # Always split across two cores when there is more than one tile so both
    # v7x TensorCores stream HBM.  Odd tile counts get one phantom step that
    # re-reads the last real tile (clamped index map) and is skipped in-kernel.
    if n_tiles >= 2:
        g_outer, g_inner = 2, _cdiv(n_tiles, 2)
    else:
        g_outer, g_inner = 1, 1
    grid_tiles = g_outer * g_inner
    last_tile = n_tiles - 1

    if grid_tiles != n_tiles:
        def idx_map(o, j):
            return (jnp.minimum(o * g_inner + j, last_tile), 0, 0)
    else:
        def idx_map(o, j):
            return (o * g_inner + j, 0, 0)

    kernel = _make_kernel(total, n_tiles, r3, sub, lanes, g_inner, grid_tiles)

    in_spec = pl.BlockSpec((r3, sub, lanes), idx_map)
    partial_sums = pl.pallas_call(
        kernel,
        out_shape=jax.ShapeDtypeStruct((g_outer * sub, lanes), jnp.float32),
        grid_spec=pltpu.PrefetchScalarGridSpec(
            num_scalar_prefetch=0,
            grid=(g_outer, g_inner),
            in_specs=[in_spec, in_spec],
            out_specs=pl.BlockSpec((sub, lanes), lambda o, j: (o, 0)),
        ),
        compiler_params=pltpu.CompilerParams(
            dimension_semantics=("parallel", "arbitrary"),
            vmem_limit_bytes=_VMEM_LIMIT),
    )(p3, g3)

    total_sum = jnp.sum(partial_sums)         # tiny final reduce in XLA
    return (1.0 - total_sum / n_positions).astype(jnp.float32)


def _reference(p, g):
    # Pure-JAX reference mirroring the PyTorch loop exactly.
    c = p.shape[1]
    loss = 0.0
    for i in range(c):
        p_i = p[:, i].reshape(-1, 1).astype(jnp.float32)
        g_i = g[:, i].reshape(-1, 1).astype(jnp.float32)
        loss = loss + jnp.sqrt(p_i * g_i + ESP)
    return jnp.mean(1.0 - loss)


if __name__ == "__main__":
    key = jax.random.PRNGKey(0)
    ks = jax.random.split(key, 8)

    # 1) NCHW probability-like inputs (channel axis reduced, rest averaged).
    p4 = jax.nn.softmax(jax.random.normal(ks[0], (2, 4, 16, 16), jnp.float32), axis=1)
    g4 = jax.nn.softmax(jax.random.normal(ks[1], (2, 4, 16, 16), jnp.float32), axis=1)
    out4 = jax.block_until_ready(fidelity_loss_distortion(p4, g4))
    ref4 = _reference(p4, g4)
    assert jnp.allclose(out4, ref4, rtol=1e-5, atol=1e-5), (out4, ref4)

    # 2) Plain (B, C) inputs.
    p2 = jax.nn.softmax(jax.random.normal(ks[2], (2, 4), jnp.float32), axis=1)
    g2 = jax.nn.softmax(jax.random.normal(ks[3], (2, 4), jnp.float32), axis=1)
    out2 = jax.block_until_ready(fidelity_loss_distortion(p2, g2))
    ref2 = _reference(p2, g2)
    assert jnp.allclose(out2, ref2, rtol=1e-5, atol=1e-5), (out2, ref2)

    # 3) bf16 inputs streamed natively (half the HBM bytes).
    pb = jax.nn.softmax(jax.random.normal(ks[4], (2, 4, 16, 16), jnp.float32), axis=1).astype(jnp.bfloat16)
    gb = jax.nn.softmax(jax.random.normal(ks[5], (2, 4, 16, 16), jnp.float32), axis=1).astype(jnp.bfloat16)
    outb = jax.block_until_ready(fidelity_loss_distortion(pb, gb))
    refb = _reference(pb, gb)
    assert jnp.allclose(outb, refb, rtol=1e-5, atol=1e-5), (outb, refb)

    # 4) Multi-tile path (ragged last tile + odd tile count -> phantom step,
    #    two-core split) exercised on a small input via a tiny tile size.
    pm = jax.nn.softmax(jax.random.normal(ks[6], (3, 7, 32, 32), jnp.float32), axis=1)
    gm = jax.nn.softmax(jax.random.normal(ks[7], (3, 7, 32, 32), jnp.float32), axis=1)
    outm = jax.block_until_ready(
        fidelity_loss_distortion(pm, gm, max_tile_bytes=32 * 1024))
    refm = _reference(pm, gm)
    assert jnp.allclose(outm, refm, rtol=1e-5, atol=1e-5), (outm, refm)

    print("KERNEL_OK")
</pallas_src>

<mosaic_0001>
module attributes {stable_mosaic.version = 11 : i64} {
  func.func @kernel(%arg0: i32, %arg1: i32, %arg2: memref<1x8x1024xf32, #tpu.memory_space<vmem>>, %arg3: memref<1x8x1024xf32, #tpu.memory_space<vmem>>, %arg4: memref<8x1024xf32, #tpu.memory_space<vmem>>) attributes {dimension_semantics = [#tpu.dimension_semantics<parallel>, #tpu.dimension_semantics<arbitrary>], iteration_bounds = array<i64: 1, 1>, scalar_prefetch = 0 : i64, scratch_operands = 0 : i64, tpu.core_type = #tpu.core_type<tc>, window_params = [{transform_indices = @transform_0, window_bounds = array<i64: 1, 8, 1024>}, {transform_indices = @transform_1, window_bounds = array<i64: 1, 8, 1024>}, {transform_indices = @transform_2, window_bounds = array<i64: 8, 1024>}]} {
    %c1_i32 = arith.constant 1 : i32
    %0 = arith.muli %arg0, %c1_i32 : i32
    %1 = arith.addi %0, %arg1 : i32
    %c0_i32 = arith.constant 0 : i32
    %2 = arith.cmpi eq, %arg1, %c0_i32 : i32
    %3 = arith.extui %2 : i1 to i32
    %c0_i32_0 = arith.constant 0 : i32
    %4 = arith.cmpi ne, %3, %c0_i32_0 : i32
    scf.if %4 {
      %cst = arith.constant 0.000000e+00 : f32
      %11 = vector.broadcast %cst : f32 to vector<8x1024xf32>
      %c0 = arith.constant 0 : index
      %c0_5 = arith.constant 0 : index
      %12 = vector.load %arg4[%c0, %c0_5] : memref<8x1024xf32, #tpu.memory_space<vmem>>, vector<8x1024xf32>
      tpu.vector_store %arg4[%c0, %c0_5], %11 {strides = array<i32>} : memref<8x1024xf32, #tpu.memory_space<vmem>>, vector<8x1024xf32>,
    } else {
    }
    %c0_i32_1 = arith.constant 0 : i32
    %5 = arith.cmpi slt, %1, %c0_i32_1 : i32
    %6 = arith.extui %5 : i1 to i32
    %c0_i32_2 = arith.constant 0 : i32
    %7 = arith.cmpi ne, %6, %c0_i32_2 : i32
    scf.if %7 {
      %c0 = arith.constant 0 : index
      %c0_5 = arith.constant 0 : index
      %11 = vector.load %arg4[%c0, %c0_5] : memref<8x1024xf32, #tpu.memory_space<vmem>>, vector<8x1024xf32>
      %cst = arith.constant 0.000000e+00 : f32
      %12 = vector.broadcast %cst : f32 to vector<8x1024xf32>
      %c0_i32_6 = arith.constant 0 : i32
      %13 = arith.index_cast %c0_i32_6 : i32 to index
      %c0_7 = arith.constant 0 : index
      %c0_8 = arith.constant 0 : index
      %14 = vector.load %arg2[%13, %c0_7, %c0_8] : memref<1x8x1024xf32, #tpu.memory_space<vmem>>, vector<1x8x1024xf32>
      %15 = vector.shape_cast %14 : vector<1x8x1024xf32> to vector<8x1024xf32>
      %16 = arith.index_cast %c0_i32_6 : i32 to index
      %c0_9 = arith.constant 0 : index
      %c0_10 = arith.constant 0 : index
      %17 = vector.load %arg3[%16, %c0_9, %c0_10] : memref<1x8x1024xf32, #tpu.memory_space<vmem>>, vector<1x8x1024xf32>
      %18 = vector.shape_cast %17 : vector<1x8x1024xf32> to vector<8x1024xf32>
      %19 = arith.mulf %15, %18 : vector<8x1024xf32>
      %cst_11 = arith.constant 9.99999996E-13 : f32
      %20 = vector.broadcast %cst_11 : f32 to vector<8x1024xf32>
      %21 = arith.addf %19, %20 : vector<8x1024xf32>
      %22 = math.sqrt %21 : vector<8x1024xf32>
      %23 = arith.addf %12, %22 : vector<8x1024xf32>
      %c1_i32_12 = arith.constant 1 : i32
      %24 = arith.addf %11, %23 : vector<8x1024xf32>
      %c0_13 = arith.constant 0 : index
      %c0_14 = arith.constant 0 : index
      %25 = vector.load %arg4[%c0_13, %c0_14] : memref<8x1024xf32, #tpu.memory_space<vmem>>, vector<8x1024xf32>
      tpu.vector_store %arg4[%c0_13, %c0_14], %24 {strides = array<i32>} : memref<8x1024xf32, #tpu.memory_space<vmem>>, vector<8x1024xf32>,
    } else {
    }
    %c0_i32_3 = arith.constant 0 : i32
    %8 = arith.cmpi eq, %1, %c0_i32_3 : i32
    %9 = arith.extui %8 : i1 to i32
    %c0_i32_4 = arith.constant 0 : i32
    %10 = arith.cmpi ne, %9, %c0_i32_4 : i32
    scf.if %10 {
      %11 = tpu.iota {dimensions = array<i32: 0>} : vector<8x1024xi32>
      %c1024_i32 = arith.constant 1024 : i32
      %12 = vector.broadcast %c1024_i32 : i32 to vector<8x1024xi32>
      %13 = arith.muli %11, %12 : vector<8x1024xi32>
      %14 = tpu.iota {dimensions = array<i32: 1>} : vector<8x1024xi32>
      %15 = arith.addi %13, %14 : vector<8x1024xi32>
      %c0 = arith.constant 0 : index
      %c0_5 = arith.constant 0 : index
      %16 = vector.load %arg4[%c0, %c0_5] : memref<8x1024xf32, #tpu.memory_space<vmem>>, vector<8x1024xf32>
      %cst = arith.constant 0.000000e+00 : f32
      %17 = vector.broadcast %cst : f32 to vector<8x1024xf32>
      %c0_i32_6 = arith.constant 0 : i32
      %c8192_i32 = arith.constant 8192 : i32
      %18 = arith.muli %c0_i32_6, %c8192_i32 : i32
      %c2048_i32 = arith.constant 2048 : i32
      %19 = arith.subi %c2048_i32, %18 : i32
      %20 = vector.broadcast %19 : i32 to vector<8x1024xi32>
      %21 = arith.cmpi slt, %15, %20 : vector<8x1024xi32>
      %22 = arith.index_cast %c0_i32_6 : i32 to index
      %c0_7 = arith.constant 0 : index
      %c0_8 = arith.constant 0 : index
      %23 = vector.load %arg2[%22, %c0_7, %c0_8] : memref<1x8x1024xf32, #tpu.memory_space<vmem>>, vector<1x8x1024xf32>
      %24 = vector.shape_cast %23 : vector<1x8x1024xf32> to vector<8x1024xf32>
      %25 = arith.index_cast %c0_i32_6 : i32 to index
      %c0_9 = arith.constant 0 : index
      %c0_10 = arith.constant 0 : index
      %26 = vector.load %arg3[%25, %c0_9, %c0_10] : memref<1x8x1024xf32, #tpu.memory_space<vmem>>, vector<1x8x1024xf32>
      %27 = vector.shape_cast %26 : vector<1x8x1024xf32> to vector<8x1024xf32>
      %28 = arith.mulf %24, %27 : vector<8x1024xf32>
      %cst_11 = arith.constant 9.99999996E-13 : f32
      %29 = vector.broadcast %cst_11 : f32 to vector<8x1024xf32>
      %30 = arith.addf %28, %29 : vector<8x1024xf32>
      %cst_12 = arith.constant 0.000000e+00 : f32
      %31 = vector.broadcast %cst_12 : f32 to vector<8x1024xf32>
      %32 = arith.select %21, %30, %31 : vector<8x1024xi1>, vector<8x1024xf32>
      %33 = math.sqrt %32 : vector<8x1024xf32>
      %34 = arith.addf %17, %33 : vector<8x1024xf32>
      %c1_i32_13 = arith.constant 1 : i32
      %35 = arith.addf %16, %34 : vector<8x1024xf32>
      %c0_14 = arith.constant 0 : index
      %c0_15 = arith.constant 0 : index
      %36 = vector.load %arg4[%c0_14, %c0_15] : memref<8x1024xf32, #tpu.memory_space<vmem>>, vector<8x1024xf32>
      tpu.vector_store %arg4[%c0_14, %c0_15], %35 {strides = array<i32>} : memref<8x1024xf32, #tpu.memory_space<vmem>>, vector<8x1024xf32>,
    } else {
    }
    return
  }
  func.func @transform_0(%arg0: i32, %arg1: i32) -> (i32, i32, i32) {
    %c1_i32 = arith.constant 1 : i32
    %0 = arith.muli %arg0, %c1_i32 : i32
    %1 = arith.addi %0, %arg1 : i32
    %c0_i32 = arith.constant 0 : i32
    %c0_i32_0 = arith.constant 0 : i32
    %c0_i32_1 = arith.constant 0 : i32
    return %1, %c0_i32, %c0_i32_0 : i32, i32, i32
  }
  func.func @transform_1(%arg0: i32, %arg1: i32) -> (i32, i32, i32) {
    %c1_i32 = arith.constant 1 : i32
    %0 = arith.muli %arg0, %c1_i32 : i32
    %1 = arith.addi %0, %arg1 : i32
    %c0_i32 = arith.constant 0 : i32
    %c0_i32_0 = arith.constant 0 : i32
    %c0_i32_1 = arith.constant 0 : i32
    return %1, %c0_i32, %c0_i32_0 : i32, i32, i32
  }
  func.func @transform_2(%arg0: i32, %arg1: i32) -> (i32, i32) {
    %c0_i32 = arith.constant 0 : i32
    %c0_i32_0 = arith.constant 0 : i32
    return %arg0, %c0_i32 : i32, i32
  }
}

</mosaic_0001>

<llo_original>
// kernel: fidelity_loss_distortion.1
$region0: #{fidelity_loss_distortion.1}
  #allocation0 [shape = 'u32[]', space=smem, size = 0x4, offset = 0x4, fixed_abs, tag = 'smem constant byte address 0x4 - core index']
  #allocation1 [shape = 'u32[144,128]{1,0:T(1,128)}', space=vmem, size = 0x12000, scoped, tag = 'internal scratch']
  %s0 = inlined_call_operand.vmem [shape: f32[1,8,1024], index: 0, kind: input, shape index: {}]
  %s1 = inlined_call_operand.vmem [shape: f32[1,8,1024], index: 1, kind: input, shape index: {}]
  %s2 = inlined_call_operand.vmem [shape: f32[8,1024], index: 2, kind: output, shape index: {}]
  %s3 = sld [smem:[#allocation0]]
  $region30: #{fidelity_loss_distortion.1} parent=0
    _
  %s5 = ssub.s32 1, %s3
  %s6 = scalar_select 0, %s5, %s3
  // Predicated region
  $region2: #{fidelity_loss_distortion.1} parent=0 // pred_check
    _
  $region3: #{fidelity_loss_distortion.1} parent=0 // pred_check_branch
    %8 = sbr.rel (0) target = $region5
  $region4: #{fidelity_loss_distortion.1} parent=0 // pred_region
    %s9 = sadd.s32 0, 0
    %p10 = scmp.lt.s32.totalorder %s9, 0
    %s11 = scalar_select %p10, %s9, 0
    %s12 = smul.addr %s11, 8
    %s13 = smul.addr %s12, 8
    %s14 = scalar_lea.vmem %s0, %s13
    %s15 = sadd.s32 0, 0
  $region5: #{fidelity_loss_distortion.1} parent=0 // pred_fallthru
    _
  // Predicated region
  $region6: #{fidelity_loss_distortion.1} parent=0 // pred_check
    _
  $region7: #{fidelity_loss_distortion.1} parent=0 // pred_check_branch
    %17 = sbr.rel (0) target = $region9
  $region8: #{fidelity_loss_distortion.1} parent=0 // pred_region
    %s18 = sadd.s32 0, 0
    %p19 = scmp.lt.s32.totalorder %s18, 0
    %s20 = scalar_select %p19, %s18, 0
    %s21 = smul.addr %s20, 8
    %s22 = smul.addr %s21, 8
    %s23 = scalar_lea.vmem %s1, %s22
    %s24 = sadd.s32 0, 0
  $region9: #{fidelity_loss_distortion.1} parent=0 // pred_fallthru
    _
  %s25 = sadd.s32 0, 0
  %p26 = scmp.lt.s32.totalorder %s25, 0
  %s27 = scalar_select %p26, %s25, 0
  %s28 = smul.addr %s27, 8
  %s29 = smul.addr %s28, 8
  %s30 = scalar_lea.vmem %s0, %s29
  %s31 = sadd.s32 0, 0
  %p32 = scmp.lt.s32.totalorder %s31, 0
  %s33 = scalar_select %p32, %s31, 0
  %s34 = smul.addr %s33, 8
  %s35 = smul.addr %s34, 8
  %s36 = scalar_lea.vmem %s1, %s35
  %s37 = sadd.s32 0, 0
  %p38 = scmp.lt.s32.totalorder %s37, 0
  %s39 = scalar_select %p38, %s37, 0
  %s40 = smul.addr %s39, 8
  %s41 = smul.addr %s40, 8
  %s42 = scalar_lea.vmem %s0, %s41
  %s43 = sadd.s32 0, 0
  %s44 = sadd.s32 0, 0
  %p45 = scmp.lt.s32.totalorder %s44, 0
  %s46 = scalar_select %p45, %s44, 0
  %s47 = smul.addr %s46, 8
  %s48 = smul.addr %s47, 8
  %s49 = scalar_lea.vmem %s1, %s48
  %s50 = sadd.s32 0, 0
  %s51 = sadd.s32 0, 0
  %p52 = scmp.eq.s32.totalorder 0, 0
  // Predicated region
  $region10: #{fidelity_loss_distortion.1} parent=0 // pred_check
    %p53 = pneg %p52
  $region11: #{fidelity_loss_distortion.1} parent=0 // pred_check_branch
    %55 = sbr.rel (%p53) target = $region13
  $region12: #{fidelity_loss_distortion.1} parent=0 // pred_region
    %56 = vst [vmem:[%s2] sm:$0xff] 0.0
    %57 = vst [vmem:[%s2 + $0x8] sm:$0xff] 0.0
    %58 = vst [vmem:[%s2 + $0x10] sm:$0xff] 0.0
    %59 = vst [vmem:[%s2 + $0x18] sm:$0xff] 0.0
    %60 = vst [vmem:[%s2 + $0x20] sm:$0xff] 0.0
    %61 = vst [vmem:[%s2 + $0x28] sm:$0xff] 0.0
    %62 = vst [vmem:[%s2 + $0x30] sm:$0xff] 0.0
    %63 = vst [vmem:[%s2 + $0x38] sm:$0xff] 0.0
  $region13: #{fidelity_loss_distortion.1} parent=0 // pred_fallthru
    _
  %p64 = scmp.lt.s32.totalorder %s51, 0
  // Predicated region
  $region14: #{fidelity_loss_distortion.1} parent=0 // pred_check
    %p65 = pneg %p64
  $region15: #{fidelity_loss_distortion.1} parent=0 // pred_check_branch
    %67 = sbr.rel (%p65) target = $region17
  $region16: #{fidelity_loss_distortion.1} parent=0 // pred_region
    %v68 = vld [vmem:[%s2] sm:$0xff]
    %v69 = vld [vmem:[%s2 + $0x8] sm:$0xff]
    %v70 = vld [vmem:[%s2 + $0x10] sm:$0xff]
    %v71 = vld [vmem:[%s2 + $0x18] sm:$0xff]
    %v72 = vld [vmem:[%s2 + $0x20] sm:$0xff]
    %v73 = vld [vmem:[%s2 + $0x28] sm:$0xff]
    %v74 = vld [vmem:[%s2 + $0x30] sm:$0xff]
    %v75 = vld [vmem:[%s2 + $0x38] sm:$0xff]
    %v76 = vld [vmem:[%s42] sm:$0xff]
    %v77 = vld [vmem:[%s42 + $0x8] sm:$0xff]
    %v78 = vld [vmem:[%s42 + $0x10] sm:$0xff]
    %v79 = vld [vmem:[%s42 + $0x18] sm:$0xff]
    %v80 = vld [vmem:[%s42 + $0x20] sm:$0xff]
    %v81 = vld [vmem:[%s42 + $0x28] sm:$0xff]
    %v82 = vld [vmem:[%s42 + $0x30] sm:$0xff]
    %v83 = vld [vmem:[%s42 + $0x38] sm:$0xff]
    %v84 = vld [vmem:[%s49] sm:$0xff]
    %v85 = vld [vmem:[%s49 + $0x8] sm:$0xff]
    %v86 = vld [vmem:[%s49 + $0x10] sm:$0xff]
    %v87 = vld [vmem:[%s49 + $0x18] sm:$0xff]
    %v88 = vld [vmem:[%s49 + $0x20] sm:$0xff]
    %v89 = vld [vmem:[%s49 + $0x28] sm:$0xff]
    %v90 = vld [vmem:[%s49 + $0x30] sm:$0xff]
    %v91 = vld [vmem:[%s49 + $0x38] sm:$0xff]
    %v92 = vmul.f32 %v76, %v84
    %v93 = vmul.f32 %v77, %v85
    %v94 = vmul.f32 %v78, %v86
    %v95 = vmul.f32 %v79, %v87
    %v96 = vmul.f32 %v80, %v88
    %v97 = vmul.f32 %v81, %v89
    %v98 = vmul.f32 %v82, %v90
    %v99 = vmul.f32 %v83, %v91
    %v100 = vadd.f32 %v92, 1e-12
    %v101 = vadd.f32 %v93, 1e-12
    %v102 = vadd.f32 %v94, 1e-12
    %v103 = vadd.f32 %v95, 1e-12
    %v104 = vadd.f32 %v96, 1e-12
    %v105 = vadd.f32 %v97, 1e-12
    %v106 = vadd.f32 %v98, 1e-12
    %v107 = vadd.f32 %v99, 1e-12
    %v108 = vrsqrt.pop %v100
    %v109 = vmul.f32 %v100, %v108
    %vm110 = vcmp.eq.f32.partialorder %v100, inf
    %v111 = vsel %vm110, %v100, %v109
    %vm112 = vcmp.eq.f32.partialorder %v100, 0.0
    %v113 = vand.u32 %v100, 2147483648
    %v114 = vsel %vm112, %v113, %v111
    %v115 = vrsqrt.pop %v101
    %v116 = vmul.f32 %v101, %v115
    %vm117 = vcmp.eq.f32.partialorder %v101, inf
    %v118 = vsel %vm117, %v101, %v116
    %vm119 = vcmp.eq.f32.partialorder %v101, 0.0
    %v120 = vand.u32 %v101, 2147483648
    %v121 = vsel %vm119, %v120, %v118
    %v122 = vrsqrt.pop %v102
    %v123 = vmul.f32 %v102, %v122
    %vm124 = vcmp.eq.f32.partialorder %v102, inf
    %v125 = vsel %vm124, %v102, %v123
    %vm126 = vcmp.eq.f32.partialorder %v102, 0.0
    %v127 = vand.u32 %v102, 2147483648
    %v128 = vsel %vm126, %v127, %v125
    %v129 = vrsqrt.pop %v103
    %v130 = vmul.f32 %v103, %v129
    %vm131 = vcmp.eq.f32.partialorder %v103, inf
    %v132 = vsel %vm131, %v103, %v130
    %vm133 = vcmp.eq.f32.partialorder %v103, 0.0
    %v134 = vand.u32 %v103, 2147483648
    %v135 = vsel %vm133, %v134, %v132
    %v136 = vrsqrt.pop %v104
    %v137 = vmul.f32 %v104, %v136
    %vm138 = vcmp.eq.f32.partialorder %v104, inf
    %v139 = vsel %vm138, %v104, %v137
    %vm140 = vcmp.eq.f32.partialorder %v104, 0.0
    %v141 = vand.u32 %v104, 2147483648
    %v142 = vsel %vm140, %v141, %v139
    %v143 = vrsqrt.pop %v105
    %v144 = vmul.f32 %v105, %v143
    %vm145 = vcmp.eq.f32.partialorder %v105, inf
    %v146 = vsel %vm145, %v105, %v144
    %vm147 = vcmp.eq.f32.partialorder %v105, 0.0
    %v148 = vand.u32 %v105, 2147483648
    %v149 = vsel %vm147, %v148, %v146
    %v150 = vrsqrt.pop %v106
    %v151 = vmul.f32 %v106, %v150
    %vm152 = vcmp.eq.f32.partialorder %v106, inf
    %v153 = vsel %vm152, %v106, %v151
    %vm154 = vcmp.eq.f32.partialorder %v106, 0.0
    %v155 = vand.u32 %v106, 2147483648
    %v156 = vsel %vm154, %v155, %v153
    %v157 = vrsqrt.pop %v107
    %v158 = vmul.f32 %v107, %v157
    %vm159 = vcmp.eq.f32.partialorder %v107, inf
    %v160 = vsel %vm159, %v107, %v158
    %vm161 = vcmp.eq.f32.partialorder %v107, 0.0
    %v162 = vand.u32 %v107, 2147483648
    %v163 = vsel %vm161, %v162, %v160
    %v164 = vadd.f32 %v114, 0.0
    %v165 = vadd.f32 %v121, 0.0
    %v166 = vadd.f32 %v128, 0.0
    %v167 = vadd.f32 %v135, 0.0
    %v168 = vadd.f32 %v142, 0.0
    %v169 = vadd.f32 %v149, 0.0
    %v170 = vadd.f32 %v156, 0.0
    %v171 = vadd.f32 %v163, 0.0
    %v172 = vadd.f32 %v68, %v164
    %v173 = vadd.f32 %v69, %v165
    %v174 = vadd.f32 %v70, %v166
    %v175 = vadd.f32 %v71, %v167
    %v176 = vadd.f32 %v72, %v168
    %v177 = vadd.f32 %v73, %v169
    %v178 = vadd.f32 %v74, %v170
    %v179 = vadd.f32 %v75, %v171
    %180 = vst [vmem:[%s2] sm:$0xff] %v172
    %181 = vst [vmem:[%s2 + $0x8] sm:$0xff] %v173
    %182 = vst [vmem:[%s2 + $0x10] sm:$0xff] %v174
    %183 = vst [vmem:[%s2 + $0x18] sm:$0xff] %v175
    %184 = vst [vmem:[%s2 + $0x20] sm:$0xff] %v176
    %185 = vst [vmem:[%s2 + $0x28] sm:$0xff] %v177
    %186 = vst [vmem:[%s2 + $0x30] sm:$0xff] %v178
    %187 = vst [vmem:[%s2 + $0x38] sm:$0xff] %v179
  $region17: #{fidelity_loss_distortion.1} parent=0 // pred_fallthru
    _
  %p188 = scmp.eq.s32.totalorder %s51, 0
  // Predicated region
  $region18: #{fidelity_loss_distortion.1} parent=0 // pred_check
    %p189 = pneg %p188
  $region19: #{fidelity_loss_distortion.1} parent=0 // pred_check_branch
    %191 = sbr.rel (%p189) target = $region21
  $region20: #{fidelity_loss_distortion.1} parent=0 // pred_region
    %v192 = vlaneseq
    %v193 = vshrl.u32 %v192, 7
    %v194 = vmul.u32 %v193, 1024
    %v195 = vlaneseq
    %v196 = vand.u32 %v195, 127
    %v197 = vadd.s32 %v196, 128
    %v198 = vadd.s32 %v196, 256
    %v199 = vadd.s32 %v196, 384
    %v200 = vadd.s32 %v196, 512
    %v201 = vadd.s32 %v196, 640
    %v202 = vadd.s32 %v196, 768
    %v203 = vadd.s32 %v196, 896
    %v204 = vadd.s32 %v194, %v196
    %v205 = vadd.s32 %v194, %v197
    %v206 = vadd.s32 %v194, %v198
    %v207 = vadd.s32 %v194, %v199
    %v208 = vadd.s32 %v194, %v200
    %v209 = vadd.s32 %v194, %v201
    %v210 = vadd.s32 %v194, %v202
    %v211 = vadd.s32 %v194, %v203
    %v212 = vld [vmem:[%s2] sm:$0xff]
    %v213 = vld [vmem:[%s2 + $0x8] sm:$0xff]
    %v214 = vld [vmem:[%s2 + $0x10] sm:$0xff]
    %v215 = vld [vmem:[%s2 + $0x18] sm:$0xff]
    %v216 = vld [vmem:[%s2 + $0x20] sm:$0xff]
    %v217 = vld [vmem:[%s2 + $0x28] sm:$0xff]
    %v218 = vld [vmem:[%s2 + $0x30] sm:$0xff]
    %v219 = vld [vmem:[%s2 + $0x38] sm:$0xff]
    %vm220 = vcmp.lt.s32.totalorder %v204, 2048
    %vm221 = vcmp.lt.s32.totalorder %v205, 2048
    %vm222 = vcmp.lt.s32.totalorder %v206, 2048
    %vm223 = vcmp.lt.s32.totalorder %v207, 2048
    %vm224 = vcmp.lt.s32.totalorder %v208, 2048
    %vm225 = vcmp.lt.s32.totalorder %v209, 2048
    %vm226 = vcmp.lt.s32.totalorder %v210, 2048
    %vm227 = vcmp.lt.s32.totalorder %v211, 2048
    %v228 = vld [vmem:[%s42] sm:$0xff]
    %v229 = vld [vmem:[%s42 + $0x8] sm:$0xff]
    %v230 = vld [vmem:[%s42 + $0x10] sm:$0xff]
    %v231 = vld [vmem:[%s42 + $0x18] sm:$0xff]
    %v232 = vld [vmem:[%s42 + $0x20] sm:$0xff]
    %v233 = vld [vmem:[%s42 + $0x28] sm:$0xff]
    %v234 = vld [vmem:[%s42 + $0x30] sm:$0xff]
    %v235 = vld [vmem:[%s42 + $0x38] sm:$0xff]
    %v236 = vld [vmem:[%s49] sm:$0xff]
    %v237 = vld [vmem:[%s49 + $0x8] sm:$0xff]
    %v238 = vld [vmem:[%s49 + $0x10] sm:$0xff]
    %v239 = vld [vmem:[%s49 + $0x18] sm:$0xff]
    %v240 = vld [vmem:[%s49 + $0x20] sm:$0xff]
    %v241 = vld [vmem:[%s49 + $0x28] sm:$0xff]
    %v242 = vld [vmem:[%s49 + $0x30] sm:$0xff]
    %v243 = vld [vmem:[%s49 + $0x38] sm:$0xff]
    %v244 = vmul.f32 %v228, %v236
    %v245 = vmul.f32 %v229, %v237
    %v246 = vmul.f32 %v230, %v238
    %v247 = vmul.f32 %v231, %v239
    %v248 = vmul.f32 %v232, %v240
    %v249 = vmul.f32 %v233, %v241
    %v250 = vmul.f32 %v234, %v242
    %v251 = vmul.f32 %v235, %v243
    %v252 = vadd.f32 %v244, 1e-12
    %v253 = vadd.f32 %v245, 1e-12
    %v254 = vadd.f32 %v246, 1e-12
    %v255 = vadd.f32 %v247, 1e-12
    %v256 = vadd.f32 %v248, 1e-12
    %v257 = vadd.f32 %v249, 1e-12
    %v258 = vadd.f32 %v250, 1e-12
    %v259 = vadd.f32 %v251, 1e-12
    %v260 = vsel %vm220, %v252, 0.0
    %v261 = vsel %vm221, %v253, 0.0
    %v262 = vsel %vm222, %v254, 0.0
    %v263 = vsel %vm223, %v255, 0.0
    %v264 = vsel %vm224, %v256, 0.0
    %v265 = vsel %vm225, %v257, 0.0
    %v266 = vsel %vm226, %v258, 0.0
    %v267 = vsel %vm227, %v259, 0.0
    %v268 = vrsqrt.pop %v260
    %v269 = vmul.f32 %v260, %v268
    %vm270 = vcmp.eq.f32.partialorder %v260, inf
    %v271 = vsel %vm270, %v260, %v269
    %vm272 = vcmp.eq.f32.partialorder %v260, 0.0
    %v273 = vand.u32 %v260, 2147483648
    %v274 = vsel %vm272, %v273, %v271
    %v275 = vrsqrt.pop %v261
    %v276 = vmul.f32 %v261, %v275
    %vm277 = vcmp.eq.f32.partialorder %v261, inf
    %v278 = vsel %vm277, %v261, %v276
    %vm279 = vcmp.eq.f32.partialorder %v261, 0.0
    %v280 = vand.u32 %v261, 2147483648
    %v281 = vsel %vm279, %v280, %v278
    %v282 = vrsqrt.pop %v262
    %v283 = vmul.f32 %v262, %v282
    %vm284 = vcmp.eq.f32.partialorder %v262, inf
    %v285 = vsel %vm284, %v262, %v283
    %vm286 = vcmp.eq.f32.partialorder %v262, 0.0
    %v287 = vand.u32 %v262, 2147483648
    %v288 = vsel %vm286, %v287, %v285
    %v289 = vrsqrt.pop %v263
    %v290 = vmul.f32 %v263, %v289
    %vm291 = vcmp.eq.f32.partialorder %v263, inf
    %v292 = vsel %vm291, %v263, %v290
    %vm293 = vcmp.eq.f32.partialorder %v263, 0.0
    %v294 = vand.u32 %v263, 2147483648
    %v295 = vsel %vm293, %v294, %v292
    %v296 = vrsqrt.pop %v264
    %v297 = vmul.f32 %v264, %v296
    %vm298 = vcmp.eq.f32.partialorder %v264, inf
    %v299 = vsel %vm298, %v264, %v297
    %vm300 = vcmp.eq.f32.partialorder %v264, 0.0
    %v301 = vand.u32 %v264, 2147483648
    %v302 = vsel %vm300, %v301, %v299
    %v303 = vrsqrt.pop %v265
    %v304 = vmul.f32 %v265, %v303
    %vm305 = vcmp.eq.f32.partialorder %v265, inf
    %v306 = vsel %vm305, %v265, %v304
    %vm307 = vcmp.eq.f32.partialorder %v265, 0.0
    %v308 = vand.u32 %v265, 2147483648
    %v309 = vsel %vm307, %v308, %v306
    %v310 = vrsqrt.pop %v266
    %v311 = vmul.f32 %v266, %v310
    %vm312 = vcmp.eq.f32.partialorder %v266, inf
    %v313 = vsel %vm312, %v266, %v311
    %vm314 = vcmp.eq.f32.partialorder %v266, 0.0
    %v315 = vand.u32 %v266, 2147483648
    %v316 = vsel %vm314, %v315, %v313
    %v317 = vrsqrt.pop %v267
    %v318 = vmul.f32 %v267, %v317
    %vm319 = vcmp.eq.f32.partialorder %v267, inf
    %v320 = vsel %vm319, %v267, %v318
    %vm321 = vcmp.eq.f32.partialorder %v267, 0.0
    %v322 = vand.u32 %v267, 2147483648
    %v323 = vsel %vm321, %v322, %v320
    %v324 = vadd.f32 %v274, 0.0
    %v325 = vadd.f32 %v281, 0.0
    %v326 = vadd.f32 %v288, 0.0
    %v327 = vadd.f32 %v295, 0.0
    %v328 = vadd.f32 %v302, 0.0
    %v329 = vadd.f32 %v309, 0.0
    %v330 = vadd.f32 %v316, 0.0
    %v331 = vadd.f32 %v323, 0.0
    %v332 = vadd.f32 %v212, %v324
    %v333 = vadd.f32 %v213, %v325
    %v334 = vadd.f32 %v214, %v326
    %v335 = vadd.f32 %v215, %v327
    %v336 = vadd.f32 %v216, %v328
    %v337 = vadd.f32 %v217, %v329
    %v338 = vadd.f32 %v218, %v330
    %v339 = vadd.f32 %v219, %v331
    %340 = vst [vmem:[%s2] sm:$0xff] %v332
    %341 = vst [vmem:[%s2 + $0x8] sm:$0xff] %v333
    %342 = vst [vmem:[%s2 + $0x10] sm:$0xff] %v334
    %343 = vst [vmem:[%s2 + $0x18] sm:$0xff] %v335
    %344 = vst [vmem:[%s2 + $0x20] sm:$0xff] %v336
    %345 = vst [vmem:[%s2 + $0x28] sm:$0xff] %v337
    %346 = vst [vmem:[%s2 + $0x30] sm:$0xff] %v338
    %347 = vst [vmem:[%s2 + $0x38] sm:$0xff] %v339
  $region21: #{fidelity_loss_distortion.1} parent=0 // pred_fallthru
    _
  // Predicated region
  $region22: #{fidelity_loss_distortion.1} parent=0 // pred_check
    _
  $region23: #{fidelity_loss_distortion.1} parent=0 // pred_check_branch
    %349 = sbr.rel (0) target = $region25
  $region24: #{fidelity_loss_distortion.1} parent=0 // pred_region
    _
  $region25: #{fidelity_loss_distortion.1} parent=0 // pred_fallthru
    _
  // Predicated region
  $region26: #{fidelity_loss_distortion.1} parent=0 // pred_check
    _
  $region27: #{fidelity_loss_distortion.1} parent=0 // pred_check_branch
    %351 = sbr.rel (0) target = $region29
  $region28: #{fidelity_loss_distortion.1} parent=0 // pred_region
    _
  $region29: #{fidelity_loss_distortion.1} parent=0 // pred_fallthru
    _

</llo_original>
